<compile_context>
chip_gen: v6e
topology: v6e:2x2x1
jax: 0.10.0
libtpu: 0.0.40
codegen_flags: <defaults>
</compile_context>

<pallas_src>
import functools

import jax
import jax.numpy as jnp
from jax import lax
from jax.experimental import pallas as pl
from jax.experimental.pallas import tpu as pltpu


def _round_up(x, m):
    return (x + m - 1) // m * m


# ------------------------- Pallas kernel (hot path) -------------------------

def tabular_mlp_kernel(x_cat_ref, x_cont_ref, w1c_ref, w1n_ref, b1_ref,
                       w2_ref, b2_ref, out_ref, *, cat_offsets, compute_dtype):
    bb = x_cat_ref.shape[0]
    k_cat_pad = w1c_ref.shape[0]
    n_cont = x_cont_ref.shape[1]

    # Multi-hot encode the int32 category codes directly in VMEM.  Feature j
    # owns the disjoint lane range [cat_offsets[j], cat_offsets[j]+cat_sz_j);
    # the folded W1_cat rows for that range already contain E_j @ W1[seg_j],
    # so  multihot @ W1_cat == concat(embeddings) @ W1[:n_emb].
    idx = x_cat_ref[...]                                     # (bb, n_cat) int32
    lane = lax.broadcasted_iota(jnp.int32, (bb, k_cat_pad), 1)
    hot = None
    for j, off in enumerate(cat_offsets):
        m = lane == (idx[:, j:j + 1] + off)
        hot = m if hot is None else (hot | m)
    multihot = hot.astype(jnp.float32).astype(compute_dtype)

    # Linear #1, embedding half as one-hot matmul (bf16 operands, f32 acc).
    h = jnp.dot(multihot, w1c_ref[...], preferred_element_type=jnp.float32)

    # Continuous half on the VPU in f32 (n_cont is tiny; BN_cont pre-folded).
    xc = x_cont_ref[...]                                     # (bb, n_cont) f32
    w1n = w1n_ref[...]                                       # (n_cont, H) f32
    for c in range(n_cont):
        h = h + xc[:, c:c + 1] * w1n[c:c + 1, :]

    h = jnp.maximum(h + b1_ref[...], 0.0)                    # bias + ReLU (f32)
    # TODO(synk): training-mode Dropout / BatchNorm batch-stats would need a
    # separate kernel (pltpu.prng_* + batch reductions); eval mode is identity.

    # Linear #2 (BN_hidden pre-folded; bf16 operands, f32 acc).
    out_ref[...] = (jnp.dot(h.astype(w2_ref.dtype), w2_ref[...],
                            preferred_element_type=jnp.float32) + b2_ref[...])


def _pick_block_b(B, requested):
    """Large tiles amortize ~0.35us/step; keep >=2 steps for v7x's 2 TCs."""
    requested = max(8, _round_up(requested, 8))
    if B <= 1024:
        return min(B, requested)                 # tiny batch: one (few) block(s)
    if B <= requested:
        return min(_round_up(pl.cdiv(B, 2), 8), requested)   # >= 2 grid steps
    return requested


def tabular_mlp_pallas(x_cat, x_cont, w1_cat, w1_cont, b1, w2, b2, *,
                       cat_offsets, block_b=4096):
    B, n_cat = x_cat.shape
    n_cont = x_cont.shape[1]
    k_cat_pad, hidden = w1_cat.shape
    out_sz = w2.shape[1]

    block_b = _pick_block_b(B, block_b)
    grid = (pl.cdiv(B, block_b),)       # ragged tail handled by masked block I/O

    kernel = functools.partial(tabular_mlp_kernel,
                               cat_offsets=tuple(cat_offsets),
                               compute_dtype=w1_cat.dtype)

    def _nbytes(a):
        return a.size * a.dtype.itemsize

    cost = pl.CostEstimate(
        flops=2 * B * hidden * (k_cat_pad + n_cont + out_sz),
        transcendentals=0,
        bytes_accessed=(_nbytes(x_cat) + _nbytes(x_cont) + B * out_sz * 4
                        + _nbytes(w1_cat) + _nbytes(w1_cont) + _nbytes(b1)
                        + _nbytes(w2) + _nbytes(b2)),
    )

    return pl.pallas_call(
        kernel,
        out_shape=jax.ShapeDtypeStruct((B, out_sz), jnp.float32),
        grid=grid,
        in_specs=[
            pl.BlockSpec((block_b, n_cat), lambda i: (i, 0)),      # raw cat codes
            pl.BlockSpec((block_b, n_cont), lambda i: (i, 0)),     # raw cont feats
            pl.BlockSpec((k_cat_pad, hidden), lambda i: (0, 0)),   # W1_cat (resident)
            pl.BlockSpec((n_cont, hidden), lambda i: (0, 0)),      # W1_cont (resident)
            pl.BlockSpec((1, hidden), lambda i: (0, 0)),           # b1 (resident)
            pl.BlockSpec((hidden, out_sz), lambda i: (0, 0)),      # W2 (resident)
            pl.BlockSpec((1, out_sz), lambda i: (0, 0)),           # b2 (resident)
        ],
        # out_sz=2 < 128 -> masked vst, hidden under DMA.  Do NOT pad the
        # output to 128 lanes (that would 64x the HBM writeback).
        out_specs=pl.BlockSpec((block_b, out_sz), lambda i: (i, 0)),
        compiler_params=pltpu.CompilerParams(
            dimension_semantics=("parallel",)),
        # Weights are <40 KB; per-step buffers are lane-padded (block_b, 128)
        # tiles, well inside the scoped-VMEM default on all generations at
        # block_b=4096.  Set vmem_limit_bytes only for block_b >> 16K rows.
        cost_estimate=cost,
    )(x_cat, x_cont, w1_cat, w1_cont, b1, w2, b2)


# ------------------------------ Parameters -----------------------------------

def make_params(key, cat_szs, n_cont, hidden, out_sz):
    """Synthetic parameters matching TabularModel's shapes (PyTorch layout)."""
    emb_szs = [(s, min(50, (s + 1) // 2)) for s in cat_szs]
    n_emb = sum(nf for _, nf in emb_szs)
    n_in = n_emb + n_cont

    keys = jax.random.split(key, 16)
    p = {"eps": 1e-5}

    p["emb_tables"] = [jax.random.normal(keys[j], (ni, nf), jnp.float32) * 0.1
                       for j, (ni, nf) in enumerate(emb_szs)]

    # BatchNorm1d(n_cont) -- eval mode uses running stats.
    p["bn_c_gamma"] = jnp.ones((1, n_cont), jnp.float32) * 1.1
    p["bn_c_beta"] = jnp.full((1, n_cont), 0.05, jnp.float32)
    p["bn_c_mean"] = jnp.full((1, n_cont), 0.2, jnp.float32)
    p["bn_c_var"] = jnp.full((1, n_cont), 1.5, jnp.float32)

    # Linear(n_in, hidden), stored transposed (in_features, out_features).
    p["w1"] = jax.random.normal(keys[8], (n_in, hidden), jnp.float32) * 0.05
    p["b1"] = jax.random.normal(keys[9], (1, hidden), jnp.float32) * 0.01

    # BatchNorm1d(hidden).
    p["bn_h_gamma"] = jnp.ones((1, hidden), jnp.float32) * 0.9
    p["bn_h_beta"] = jnp.full((1, hidden), -0.02, jnp.float32)
    p["bn_h_mean"] = jnp.full((1, hidden), 0.1, jnp.float32)
    p["bn_h_var"] = jnp.full((1, hidden), 0.8, jnp.float32)

    # Final Linear(hidden, out_sz).
    p["w2"] = jax.random.normal(keys[10], (hidden, out_sz), jnp.float32) * 0.05
    p["b2"] = jax.random.normal(keys[11], (1, out_sz), jnp.float32) * 0.01

    return p, emb_szs, n_emb


def fold_params(p, *, compute_dtype=jnp.bfloat16):
    """Fold embeddings + eval-mode BNs into the two Linears; pad to 128 lanes."""
    eps = p["eps"]
    emb_tables = p["emb_tables"]
    cat_szs = [int(t.shape[0]) for t in emb_tables]
    n_emb = sum(int(t.shape[1]) for t in emb_tables)
    w1, b1, w2, b2 = p["w1"], p["b1"], p["w2"], p["b2"]
    hidden = w1.shape[1]

    # Embedding lookup + embedding half of Linear#1 -> one-hot matmul rows:
    # W1_cat[rows of feature j] = E_j @ W1[emb_segment_j].
    blocks, off = [], 0
    for tbl in emb_tables:
        nf = tbl.shape[1]
        blocks.append(tbl @ w1[off:off + nf])
        off += nf
    w1_cat = jnp.concatenate(blocks, axis=0)             # (sum(cat_szs), hidden)

    # BN_cont (eval) -> affine folded into the continuous rows of W1 and b1.
    w1_cont_raw = w1[n_emb:]
    c_scale = p["bn_c_gamma"] / jnp.sqrt(p["bn_c_var"] + eps)
    c_bias = p["bn_c_beta"] - p["bn_c_mean"] * c_scale
    w1_cont = w1_cont_raw * c_scale.T
    b1f = b1 + c_bias @ w1_cont_raw

    # BN_hidden (eval) -> affine folded into W2/b2 (applied after ReLU).
    h_scale = p["bn_h_gamma"] / jnp.sqrt(p["bn_h_var"] + eps)
    h_bias = p["bn_h_beta"] - p["bn_h_mean"] * h_scale
    w2f = w2 * h_scale.T
    b2f = b2 + h_bias @ w2

    # Zero-pad categorical K and hidden to full 128-lane tiles.  Padded rows /
    # cols are inert: the multi-hot never selects padded K rows; padded hidden
    # cols have zero weight+bias (ReLU keeps them 0) and zero W2 rows.
    k_cat = sum(cat_szs)
    k_cat_pad = max(128, _round_up(k_cat, 128))
    hidden_pad = max(128, _round_up(hidden, 128))
    w1_cat = jnp.pad(w1_cat, ((0, k_cat_pad - k_cat), (0, hidden_pad - hidden)))
    w1_cont = jnp.pad(w1_cont, ((0, 0), (0, hidden_pad - hidden)))
    b1f = jnp.pad(b1f, ((0, 0), (0, hidden_pad - hidden)))
    w2f = jnp.pad(w2f, ((0, hidden_pad - hidden), (0, 0)))

    cat_offsets, acc = [], 0
    for s in cat_szs:
        cat_offsets.append(acc)
        acc += s

    return {
        "w1_cat": w1_cat.astype(compute_dtype),
        "w1_cont": w1_cont.astype(jnp.float32),
        "b1": b1f.astype(jnp.float32),
        "w2": w2f.astype(compute_dtype),
        "b2": b2f.astype(jnp.float32),
        "cat_offsets": tuple(cat_offsets),
    }


# ------------------------------ Model wrapper --------------------------------

@functools.partial(jax.jit, static_argnames=("cat_offsets", "block_b"))
def tabular_model_forward(x_cat, x_cont, w1_cat, w1_cont, b1, w2, b2, *,
                          cat_offsets, block_b=4096):
    # Eval-mode forward: Dropouts are identity; embedding lookups and both
    # BatchNorms live inside the folded weights, so the raw int32/f32 inputs
    # go straight into the kernel with no gathered-x HBM round trip.
    return tabular_mlp_pallas(x_cat, x_cont, w1_cat, w1_cont, b1, w2, b2,
                              cat_offsets=cat_offsets, block_b=block_b)


def reference_forward(x_cat, x_cont, p):
    """Pure-JAX f32 reference following the original (unfolded) module."""
    eps = p["eps"]
    embs = [jnp.take(tbl, x_cat[:, i], axis=0)
            for i, tbl in enumerate(p["emb_tables"])]
    x_emb = jnp.concatenate(embs, axis=1)
    xc = ((x_cont - p["bn_c_mean"]) / jnp.sqrt(p["bn_c_var"] + eps)
          * p["bn_c_gamma"] + p["bn_c_beta"])
    x = jnp.concatenate([x_emb, xc], axis=1)
    h = jnp.maximum(x @ p["w1"] + p["b1"], 0.0)
    h = ((h - p["bn_h_mean"]) / jnp.sqrt(p["bn_h_var"] + eps)
         * p["bn_h_gamma"] + p["bn_h_beta"])
    return h @ p["w2"] + p["b2"]


# ----------------------------------- Main -------------------------------------

if __name__ == "__main__":
    # Census-income-like categorical cardinalities:
    # sex=2, education=16, marital-status=7, workclass=9, occupation=15
    cat_szs = [2, 16, 7, 9, 15]
    n_cont = 2          # e.g. age, hours-per-week
    hidden = 50         # layers=[50]
    out_sz = 2
    B = 64

    key = jax.random.PRNGKey(0)
    kp, kc, kx = jax.random.split(key, 3)
    params, emb_szs, n_emb = make_params(kp, cat_szs, n_cont, hidden, out_sz)
    folded = fold_params(params)

    # Deterministic example inputs.
    x_cat = jnp.stack(
        [jax.random.randint(jax.random.fold_in(kc, i), (B,), 0, s)
         for i, s in enumerate(cat_szs)], axis=1).astype(jnp.int32)
    x_cont = jax.random.normal(kx, (B, n_cont), jnp.float32)

    out = tabular_model_forward(
        x_cat, x_cont, folded["w1_cat"], folded["w1_cont"], folded["b1"],
        folded["w2"], folded["b2"], cat_offsets=folded["cat_offsets"],
        block_b=4096)
    out = jax.block_until_ready(out)

    ref = reference_forward(x_cat, x_cont, params)
    assert out.shape == (B, out_sz)
    err = float(jnp.max(jnp.abs(out - ref)))
    assert jnp.allclose(out, ref, atol=2e-2, rtol=2e-2), ("max abs diff:", err)

    print("KERNEL_OK")
</pallas_src>

<mosaic_0001>
module attributes {stable_mosaic.version = 11 : i64} {
  func.func @tabular_mlp_kernel(%arg0: i32, %arg1: memref<64x5xi32, #tpu.memory_space<vmem>>, %arg2: memref<64x2xf32, #tpu.memory_space<vmem>>, %arg3: memref<128x128xbf16, #tpu.memory_space<vmem>>, %arg4: memref<2x128xf32, #tpu.memory_space<vmem>>, %arg5: memref<1x128xf32, #tpu.memory_space<vmem>>, %arg6: memref<128x2xbf16, #tpu.memory_space<vmem>>, %arg7: memref<1x2xf32, #tpu.memory_space<vmem>>, %arg8: memref<64x2xf32, #tpu.memory_space<vmem>>) attributes {dimension_semantics = [#tpu.dimension_semantics<parallel>], iteration_bounds = array<i64: 1>, scalar_prefetch = 0 : i64, scratch_operands = 0 : i64, tpu.core_type = #tpu.core_type<tc>, window_params = [{transform_indices = @transform_0, window_bounds = array<i64: 64, 5>}, {transform_indices = @transform_1, window_bounds = array<i64: 64, 2>}, {pipeline_mode = #tpu.pipeline_mode<synchronous>, transform_indices = @transform_2, window_bounds = array<i64: 128, 128>}, {pipeline_mode = #tpu.pipeline_mode<synchronous>, transform_indices = @transform_3, window_bounds = array<i64: 2, 128>}, {pipeline_mode = #tpu.pipeline_mode<synchronous>, transform_indices = @transform_4, window_bounds = array<i64: 1, 128>}, {pipeline_mode = #tpu.pipeline_mode<synchronous>, transform_indices = @transform_5, window_bounds = array<i64: 128, 2>}, {pipeline_mode = #tpu.pipeline_mode<synchronous>, transform_indices = @transform_6, window_bounds = array<i64: 1, 2>}, {transform_indices = @transform_7, window_bounds = array<i64: 64, 2>}]} {
    %c0 = arith.constant 0 : index
    %c0_0 = arith.constant 0 : index
    %0 = vector.load %arg1[%c0, %c0_0] : memref<64x5xi32, #tpu.memory_space<vmem>>, vector<64x5xi32>
    %1 = tpu.iota {dimensions = array<i32: 1>} : vector<64x128xi32>
    %2 = vector.extract_strided_slice %0 {offsets = [0, 0], sizes = [64, 1], strides = [1, 1]} : vector<64x5xi32> to vector<64x1xi32>
    %c0_i32 = arith.constant 0 : i32
    %3 = vector.broadcast %c0_i32 : i32 to vector<64x1xi32>
    %4 = arith.addi %2, %3 : vector<64x1xi32>
    %5 = vector.broadcast %4 : vector<64x1xi32> to vector<64x128xi32>
    %6 = arith.cmpi eq, %1, %5 : vector<64x128xi32>
    %7 = vector.extract_strided_slice %0 {offsets = [0, 1], sizes = [64, 1], strides = [1, 1]} : vector<64x5xi32> to vector<64x1xi32>
    %c2_i32 = arith.constant 2 : i32
    %8 = vector.broadcast %c2_i32 : i32 to vector<64x1xi32>
    %9 = arith.addi %7, %8 : vector<64x1xi32>
    %10 = vector.broadcast %9 : vector<64x1xi32> to vector<64x128xi32>
    %11 = arith.cmpi eq, %1, %10 : vector<64x128xi32>
    %12 = arith.ori %6, %11 : vector<64x128xi1>
    %13 = vector.extract_strided_slice %0 {offsets = [0, 2], sizes = [64, 1], strides = [1, 1]} : vector<64x5xi32> to vector<64x1xi32>
    %c18_i32 = arith.constant 18 : i32
    %14 = vector.broadcast %c18_i32 : i32 to vector<64x1xi32>
    %15 = arith.addi %13, %14 : vector<64x1xi32>
    %16 = vector.broadcast %15 : vector<64x1xi32> to vector<64x128xi32>
    %17 = arith.cmpi eq, %1, %16 : vector<64x128xi32>
    %18 = arith.ori %12, %17 : vector<64x128xi1>
    %19 = vector.extract_strided_slice %0 {offsets = [0, 3], sizes = [64, 1], strides = [1, 1]} : vector<64x5xi32> to vector<64x1xi32>
    %c25_i32 = arith.constant 25 : i32
    %20 = vector.broadcast %c25_i32 : i32 to vector<64x1xi32>
    %21 = arith.addi %19, %20 : vector<64x1xi32>
    %22 = vector.broadcast %21 : vector<64x1xi32> to vector<64x128xi32>
    %23 = arith.cmpi eq, %1, %22 : vector<64x128xi32>
    %24 = arith.ori %18, %23 : vector<64x128xi1>
    %25 = vector.extract_strided_slice %0 {offsets = [0, 4], sizes = [64, 1], strides = [1, 1]} : vector<64x5xi32> to vector<64x1xi32>
    %c34_i32 = arith.constant 34 : i32
    %26 = vector.broadcast %c34_i32 : i32 to vector<64x1xi32>
    %27 = arith.addi %25, %26 : vector<64x1xi32>
    %28 = vector.broadcast %27 : vector<64x1xi32> to vector<64x128xi32>
    %29 = arith.cmpi eq, %1, %28 : vector<64x128xi32>
    %30 = arith.ori %24, %29 : vector<64x128xi1>
    %31 = arith.extui %30 : vector<64x128xi1> to vector<64x128xi32>
    %32 = arith.sitofp %31 : vector<64x128xi32> to vector<64x128xf32>
    %33 = arith.truncf %32 : vector<64x128xf32> to vector<64x128xbf16>
    %c0_1 = arith.constant 0 : index
    %c0_2 = arith.constant 0 : index
    %34 = vector.load %arg3[%c0_1, %c0_2] : memref<128x128xbf16, #tpu.memory_space<vmem>>, vector<128x128xbf16>
    %cst = arith.constant dense<0.000000e+00> : vector<64x128xf32>
    %35 = tpu.matmul %33, %34, %cst {dimension_numbers = #tpu.dot_dimension_numbers<[1], [0], [0], [1], [0, 0, 1, 1], [], []>} : vector<64x128xbf16>, vector<128x128xbf16>, vector<64x128xf32> -> vector<64x128xf32>
    %c0_3 = arith.constant 0 : index
    %c0_4 = arith.constant 0 : index
    %36 = vector.load %arg2[%c0_3, %c0_4] : memref<64x2xf32, #tpu.memory_space<vmem>>, vector<64x2xf32>
    %c0_5 = arith.constant 0 : index
    %c0_6 = arith.constant 0 : index
    %37 = vector.load %arg4[%c0_5, %c0_6] : memref<2x128xf32, #tpu.memory_space<vmem>>, vector<2x128xf32>
    %38 = vector.extract_strided_slice %36 {offsets = [0, 0], sizes = [64, 1], strides = [1, 1]} : vector<64x2xf32> to vector<64x1xf32>
    %39 = vector.extract_strided_slice %37 {offsets = [0, 0], sizes = [1, 128], strides = [1, 1]} : vector<2x128xf32> to vector<1x128xf32>
    %40 = vector.broadcast %38 : vector<64x1xf32> to vector<64x128xf32>
    %41 = vector.broadcast %39 : vector<1x128xf32> to vector<64x128xf32>
    %42 = arith.mulf %40, %41 : vector<64x128xf32>
    %43 = arith.addf %35, %42 : vector<64x128xf32>
    %44 = vector.extract_strided_slice %36 {offsets = [0, 1], sizes = [64, 1], strides = [1, 1]} : vector<64x2xf32> to vector<64x1xf32>
    %45 = vector.extract_strided_slice %37 {offsets = [1, 0], sizes = [1, 128], strides = [1, 1]} : vector<2x128xf32> to vector<1x128xf32>
    %46 = vector.broadcast %44 : vector<64x1xf32> to vector<64x128xf32>
    %47 = vector.broadcast %45 : vector<1x128xf32> to vector<64x128xf32>
    %48 = arith.mulf %46, %47 : vector<64x128xf32>
    %49 = arith.addf %43, %48 : vector<64x128xf32>
    %c0_7 = arith.constant 0 : index
    %c0_8 = arith.constant 0 : index
    %50 = vector.load %arg5[%c0_7, %c0_8] : memref<1x128xf32, #tpu.memory_space<vmem>>, vector<1x128xf32>
    %51 = vector.broadcast %50 : vector<1x128xf32> to vector<64x128xf32>
    %52 = arith.addf %49, %51 : vector<64x128xf32>
    %cst_9 = arith.constant 0.000000e+00 : f32
    %53 = vector.broadcast %cst_9 : f32 to vector<64x128xf32>
    %54 = arith.maximumf %52, %53 : vector<64x128xf32>
    %55 = arith.truncf %54 : vector<64x128xf32> to vector<64x128xbf16>
    %c0_10 = arith.constant 0 : index
    %c0_11 = arith.constant 0 : index
    %56 = vector.load %arg6[%c0_10, %c0_11] : memref<128x2xbf16, #tpu.memory_space<vmem>>, vector<128x2xbf16>
    %cst_12 = arith.constant dense<0.000000e+00> : vector<64x2xf32>
    %57 = tpu.matmul %55, %56, %cst_12 {dimension_numbers = #tpu.dot_dimension_numbers<[1], [0], [0], [1], [0, 0, 1, 1], [], []>} : vector<64x128xbf16>, vector<128x2xbf16>, vector<64x2xf32> -> vector<64x2xf32>
    %c0_13 = arith.constant 0 : index
    %c0_14 = arith.constant 0 : index
    %58 = vector.load %arg7[%c0_13, %c0_14] : memref<1x2xf32, #tpu.memory_space<vmem>>, vector<1x2xf32>
    %59 = vector.broadcast %58 : vector<1x2xf32> to vector<64x2xf32>
    %60 = arith.addf %57, %59 : vector<64x2xf32>
    %c0_15 = arith.constant 0 : index
    %c0_16 = arith.constant 0 : index
    %61 = vector.load %arg8[%c0_15, %c0_16] : memref<64x2xf32, #tpu.memory_space<vmem>>, vector<64x2xf32>
    tpu.vector_store %arg8[%c0_15, %c0_16], %60 {strides = array<i32>} : memref<64x2xf32, #tpu.memory_space<vmem>>, vector<64x2xf32>,
    return
  }
  func.func @transform_0(%arg0: i32) -> (i32, i32) {
    %c0_i32 = arith.constant 0 : i32
    %c0_i32_0 = arith.constant 0 : i32
    return %arg0, %c0_i32 : i32, i32
  }
  func.func @transform_1(%arg0: i32) -> (i32, i32) {
    %c0_i32 = arith.constant 0 : i32
    %c0_i32_0 = arith.constant 0 : i32
    return %arg0, %c0_i32 : i32, i32
  }
  func.func @transform_2(%arg0: i32) -> (i32, i32) {
    %c0_i32 = arith.constant 0 : i32
    %c0_i32_0 = arith.constant 0 : i32
    %c0_i32_1 = arith.constant 0 : i32
    return %c0_i32, %c0_i32_0 : i32, i32
  }
  func.func @transform_3(%arg0: i32) -> (i32, i32) {
    %c0_i32 = arith.constant 0 : i32
    %c0_i32_0 = arith.constant 0 : i32
    %c0_i32_1 = arith.constant 0 : i32
    return %c0_i32, %c0_i32_0 : i32, i32
  }
  func.func @transform_4(%arg0: i32) -> (i32, i32) {
    %c0_i32 = arith.constant 0 : i32
    %c0_i32_0 = arith.constant 0 : i32
    %c0_i32_1 = arith.constant 0 : i32
    return %c0_i32, %c0_i32_0 : i32, i32
  }
  func.func @transform_5(%arg0: i32) -> (i32, i32) {
    %c0_i32 = arith.constant 0 : i32
    %c0_i32_0 = arith.constant 0 : i32
    %c0_i32_1 = arith.constant 0 : i32
    return %c0_i32, %c0_i32_0 : i32, i32
  }
  func.func @transform_6(%arg0: i32) -> (i32, i32) {
    %c0_i32 = arith.constant 0 : i32
    %c0_i32_0 = arith.constant 0 : i32
    %c0_i32_1 = arith.constant 0 : i32
    return %c0_i32, %c0_i32_0 : i32, i32
  }
  func.func @transform_7(%arg0: i32) -> (i32, i32) {
    %c0_i32 = arith.constant 0 : i32
    %c0_i32_0 = arith.constant 0 : i32
    return %arg0, %c0_i32 : i32, i32
  }
}

</mosaic_0001>

<llo_original>
// kernel: tabular_model_forward.1
$region0: #{tabular_model_forward.1}
  #allocation0 [shape = 'u32[]', space=smem, size = 0x4, offset = 0x4, fixed_abs, tag = 'smem constant byte address 0x4 - core index']
  #allocation1 [shape = 'u32[144,128]{1,0:T(1,128)}', space=vmem, size = 0x12000, scoped, tag = 'internal scratch']
  %s0 = inlined_call_operand.vmem [shape: s32[64,5], index: 0, kind: input, shape index: {}]
  %s1 = inlined_call_operand.vmem [shape: f32[64,2], index: 1, kind: input, shape index: {}]
  %s2 = inlined_call_operand.vmem [shape: bf16[128,128], index: 2, kind: input, shape index: {}]
  %s3 = inlined_call_operand.vmem [shape: f32[2,128], index: 3, kind: input, shape index: {}]
  %s4 = inlined_call_operand.vmem [shape: f32[1,128], index: 4, kind: input, shape index: {}]
  %s5 = inlined_call_operand.vmem [shape: bf16[128,2], index: 5, kind: input, shape index: {}]
  %s6 = inlined_call_operand.vmem [shape: f32[1,2], index: 6, kind: input, shape index: {}]
  %s7 = inlined_call_operand.vmem [shape: f32[64,2], index: 7, kind: output, shape index: {}]
  %s8 = sld [smem:[#allocation0]]
  $region38: #{tabular_model_forward.1} parent=0
    _
  %s10 = ssub.s32 1, %s8
  %s11 = scalar_select 0, %s10, %s8
  // Predicated region
  $region2: #{tabular_model_forward.1} parent=0 // pred_check
    _
  $region3: #{tabular_model_forward.1} parent=0 // pred_check_branch
    %13 = sbr.rel (0) target = $region5
  $region4: #{tabular_model_forward.1} parent=0 // pred_region
    _
  $region5: #{tabular_model_forward.1} parent=0 // pred_fallthru
    _
  // Predicated region
  $region6: #{tabular_model_forward.1} parent=0 // pred_check
    _
  $region7: #{tabular_model_forward.1} parent=0 // pred_check_branch
    %15 = sbr.rel (0) target = $region9
  $region8: #{tabular_model_forward.1} parent=0 // pred_region
    _
  $region9: #{tabular_model_forward.1} parent=0 // pred_fallthru
    _
  // Predicated region
  $region10: #{tabular_model_forward.1} parent=0 // pred_check
    _
  $region11: #{tabular_model_forward.1} parent=0 // pred_check_branch
    %17 = sbr.rel (0) target = $region13
  $region12: #{tabular_model_forward.1} parent=0 // pred_region
    _
  $region13: #{tabular_model_forward.1} parent=0 // pred_fallthru
    _
  // Predicated region
  $region14: #{tabular_model_forward.1} parent=0 // pred_check
    _
  $region15: #{tabular_model_forward.1} parent=0 // pred_check_branch
    %19 = sbr.rel (0) target = $region17
  $region16: #{tabular_model_forward.1} parent=0 // pred_region
    _
  $region17: #{tabular_model_forward.1} parent=0 // pred_fallthru
    _
  // Predicated region
  $region18: #{tabular_model_forward.1} parent=0 // pred_check
    _
  $region19: #{tabular_model_forward.1} parent=0 // pred_check_branch
    %21 = sbr.rel (0) target = $region21
  $region20: #{tabular_model_forward.1} parent=0 // pred_region
    _
  $region21: #{tabular_model_forward.1} parent=0 // pred_fallthru
    _
  // Predicated region
  $region22: #{tabular_model_forward.1} parent=0 // pred_check
    _
  $region23: #{tabular_model_forward.1} parent=0 // pred_check_branch
    %23 = sbr.rel (0) target = $region25
  $region24: #{tabular_model_forward.1} parent=0 // pred_region
    _
  $region25: #{tabular_model_forward.1} parent=0 // pred_fallthru
    _
  // Predicated region
  $region26: #{tabular_model_forward.1} parent=0 // pred_check
    _
  $region27: #{tabular_model_forward.1} parent=0 // pred_check_branch
    %25 = sbr.rel (0) target = $region29
  $region28: #{tabular_model_forward.1} parent=0 // pred_region
    _
  $region29: #{tabular_model_forward.1} parent=0 // pred_fallthru
    _
  %v27 = vld [vmem:[%s0] sm:$0xff]
  %v28 = vld [vmem:[%s0 + $0x8] sm:$0xff]
  %v29 = vld [vmem:[%s0 + $0x10] sm:$0xff]
  %v30 = vld [vmem:[%s0 + $0x18] sm:$0xff]
  %v31 = vld [vmem:[%s0 + $0x20] sm:$0xff]
  %v32 = vld [vmem:[%s0 + $0x28] sm:$0xff]
  %v33 = vld [vmem:[%s0 + $0x30] sm:$0xff]
  %v34 = vld [vmem:[%s0 + $0x38] sm:$0xff]
  %v35 = vlaneseq
  %v36 = vand.u32 %v35, 127
  %37 = vset.pattern.permute.xlu0 0
  %38 = vperm.xlu0 %37, %v27
  %v39 = vpop.permute.xlu0 %38
  %40 = vset.pattern.permute.xlu0 0
  %41 = vperm.xlu0 %40, %v28
  %v42 = vpop.permute.xlu0 %41
  %43 = vset.pattern.permute.xlu0 0
  %44 = vperm.xlu0 %43, %v29
  %v45 = vpop.permute.xlu0 %44
  %46 = vset.pattern.permute.xlu0 0
  %47 = vperm.xlu0 %46, %v30
  %v48 = vpop.permute.xlu0 %47
  %49 = vset.pattern.permute.xlu0 0
  %50 = vperm.xlu0 %49, %v31
  %v51 = vpop.permute.xlu0 %50
  %52 = vset.pattern.permute.xlu0 0
  %53 = vperm.xlu0 %52, %v32
  %v54 = vpop.permute.xlu0 %53
  %55 = vset.pattern.permute.xlu0 0
  %56 = vperm.xlu0 %55, %v33
  %v57 = vpop.permute.xlu0 %56
  %58 = vset.pattern.permute.xlu0 0
  %59 = vperm.xlu0 %58, %v34
  %v60 = vpop.permute.xlu0 %59
  %vm61 = vcmp.eq.s32.totalorder %v36, %v39
  %vm62 = vcmp.eq.s32.totalorder %v36, %v42
  %vm63 = vcmp.eq.s32.totalorder %v36, %v45
  %vm64 = vcmp.eq.s32.totalorder %v36, %v48
  %vm65 = vcmp.eq.s32.totalorder %v36, %v51
  %vm66 = vcmp.eq.s32.totalorder %v36, %v54
  %vm67 = vcmp.eq.s32.totalorder %v36, %v57
  %vm68 = vcmp.eq.s32.totalorder %v36, %v60
  %v69 = vadd.s32 %v27, 2
  %v70 = vadd.s32 %v28, 2
  %v71 = vadd.s32 %v29, 2
  %v72 = vadd.s32 %v30, 2
  %v73 = vadd.s32 %v31, 2
  %v74 = vadd.s32 %v32, 2
  %v75 = vadd.s32 %v33, 2
  %v76 = vadd.s32 %v34, 2
  %77 = vset.pattern.permute.xlu0 1
  %78 = vperm.xlu0 %77, %v69
  %v79 = vpop.permute.xlu0 %78
  %80 = vset.pattern.permute.xlu0 1
  %81 = vperm.xlu0 %80, %v70
  %v82 = vpop.permute.xlu0 %81
  %83 = vset.pattern.permute.xlu0 1
  %84 = vperm.xlu0 %83, %v71
  %v85 = vpop.permute.xlu0 %84
  %86 = vset.pattern.permute.xlu0 1
  %87 = vperm.xlu0 %86, %v72
  %v88 = vpop.permute.xlu0 %87
  %89 = vset.pattern.permute.xlu0 1
  %90 = vperm.xlu0 %89, %v73
  %v91 = vpop.permute.xlu0 %90
  %92 = vset.pattern.permute.xlu0 1
  %93 = vperm.xlu0 %92, %v74
  %v94 = vpop.permute.xlu0 %93
  %95 = vset.pattern.permute.xlu0 1
  %96 = vperm.xlu0 %95, %v75
  %v97 = vpop.permute.xlu0 %96
  %98 = vset.pattern.permute.xlu0 1
  %99 = vperm.xlu0 %98, %v76
  %v100 = vpop.permute.xlu0 %99
  %vm101 = vcmp.eq.s32.totalorder %v36, %v79
  %vm102 = vcmp.eq.s32.totalorder %v36, %v82
  %vm103 = vcmp.eq.s32.totalorder %v36, %v85
  %vm104 = vcmp.eq.s32.totalorder %v36, %v88
  %vm105 = vcmp.eq.s32.totalorder %v36, %v91
  %vm106 = vcmp.eq.s32.totalorder %v36, %v94
  %vm107 = vcmp.eq.s32.totalorder %v36, %v97
  %vm108 = vcmp.eq.s32.totalorder %v36, %v100
  %vm109 = vmor %vm61, %vm101
  %vm110 = vmor %vm62, %vm102
  %vm111 = vmor %vm63, %vm103
  %vm112 = vmor %vm64, %vm104
  %vm113 = vmor %vm65, %vm105
  %vm114 = vmor %vm66, %vm106
  %vm115 = vmor %vm67, %vm107
  %vm116 = vmor %vm68, %vm108
  %v117 = vadd.s32 %v27, 18
  %v118 = vadd.s32 %v28, 18
  %v119 = vadd.s32 %v29, 18
  %v120 = vadd.s32 %v30, 18
  %v121 = vadd.s32 %v31, 18
  %v122 = vadd.s32 %v32, 18
  %v123 = vadd.s32 %v33, 18
  %v124 = vadd.s32 %v34, 18
  %125 = vset.pattern.permute.xlu0 2
  %126 = vperm.xlu0 %125, %v117
  %v127 = vpop.permute.xlu0 %126
  %128 = vset.pattern.permute.xlu0 2
  %129 = vperm.xlu0 %128, %v118
  %v130 = vpop.permute.xlu0 %129
  %131 = vset.pattern.permute.xlu0 2
  %132 = vperm.xlu0 %131, %v119
  %v133 = vpop.permute.xlu0 %132
  %134 = vset.pattern.permute.xlu0 2
  %135 = vperm.xlu0 %134, %v120
  %v136 = vpop.permute.xlu0 %135
  %137 = vset.pattern.permute.xlu0 2
  %138 = vperm.xlu0 %137, %v121
  %v139 = vpop.permute.xlu0 %138
  %140 = vset.pattern.permute.xlu0 2
  %141 = vperm.xlu0 %140, %v122
  %v142 = vpop.permute.xlu0 %141
  %143 = vset.pattern.permute.xlu0 2
  %144 = vperm.xlu0 %143, %v123
  %v145 = vpop.permute.xlu0 %144
  %146 = vset.pattern.permute.xlu0 2
  %147 = vperm.xlu0 %146, %v124
  %v148 = vpop.permute.xlu0 %147
  %vm149 = vcmp.eq.s32.totalorder %v36, %v127
  %vm150 = vcmp.eq.s32.totalorder %v36, %v130
  %vm151 = vcmp.eq.s32.totalorder %v36, %v133
  %vm152 = vcmp.eq.s32.totalorder %v36, %v136
  %vm153 = vcmp.eq.s32.totalorder %v36, %v139
  %vm154 = vcmp.eq.s32.totalorder %v36, %v142
  %vm155 = vcmp.eq.s32.totalorder %v36, %v145
  %vm156 = vcmp.eq.s32.totalorder %v36, %v148
  %vm157 = vmor %vm109, %vm149
  %vm158 = vmor %vm110, %vm150
  %vm159 = vmor %vm111, %vm151
  %vm160 = vmor %vm112, %vm152
  %vm161 = vmor %vm113, %vm153
  %vm162 = vmor %vm114, %vm154
  %vm163 = vmor %vm115, %vm155
  %vm164 = vmor %vm116, %vm156
  %v165 = vadd.s32 %v27, 25
  %v166 = vadd.s32 %v28, 25
  %v167 = vadd.s32 %v29, 25
  %v168 = vadd.s32 %v30, 25
  %v169 = vadd.s32 %v31, 25
  %v170 = vadd.s32 %v32, 25
  %v171 = vadd.s32 %v33, 25
  %v172 = vadd.s32 %v34, 25
  %173 = vset.pattern.permute.xlu0 3
  %174 = vperm.xlu0 %173, %v165
  %v175 = vpop.permute.xlu0 %174
  %176 = vset.pattern.permute.xlu0 3
  %177 = vperm.xlu0 %176, %v166
  %v178 = vpop.permute.xlu0 %177
  %179 = vset.pattern.permute.xlu0 3
  %180 = vperm.xlu0 %179, %v167
  %v181 = vpop.permute.xlu0 %180
  %182 = vset.pattern.permute.xlu0 3
  %183 = vperm.xlu0 %182, %v168
  %v184 = vpop.permute.xlu0 %183
  %185 = vset.pattern.permute.xlu0 3
  %186 = vperm.xlu0 %185, %v169
  %v187 = vpop.permute.xlu0 %186
  %188 = vset.pattern.permute.xlu0 3
  %189 = vperm.xlu0 %188, %v170
  %v190 = vpop.permute.xlu0 %189
  %191 = vset.pattern.permute.xlu0 3
  %192 = vperm.xlu0 %191, %v171
  %v193 = vpop.permute.xlu0 %192
  %194 = vset.pattern.permute.xlu0 3
  %195 = vperm.xlu0 %194, %v172
  %v196 = vpop.permute.xlu0 %195
  %vm197 = vcmp.eq.s32.totalorder %v36, %v175
  %vm198 = vcmp.eq.s32.totalorder %v36, %v178
  %vm199 = vcmp.eq.s32.totalorder %v36, %v181
  %vm200 = vcmp.eq.s32.totalorder %v36, %v184
  %vm201 = vcmp.eq.s32.totalorder %v36, %v187
  %vm202 = vcmp.eq.s32.totalorder %v36, %v190
  %vm203 = vcmp.eq.s32.totalorder %v36, %v193
  %vm204 = vcmp.eq.s32.totalorder %v36, %v196
  %vm205 = vmor %vm157, %vm197
  %vm206 = vmor %vm158, %vm198
  %vm207 = vmor %vm159, %vm199
  %vm208 = vmor %vm160, %vm200
  %vm209 = vmor %vm161, %vm201
  %vm210 = vmor %vm162, %vm202
  %vm211 = vmor %vm163, %vm203
  %vm212 = vmor %vm164, %vm204
  %v213 = vadd.s32 %v27, 34
  %v214 = vadd.s32 %v28, 34
  %v215 = vadd.s32 %v29, 34
  %v216 = vadd.s32 %v30, 34
  %v217 = vadd.s32 %v31, 34
  %v218 = vadd.s32 %v32, 34
  %v219 = vadd.s32 %v33, 34
  %v220 = vadd.s32 %v34, 34
  %221 = vset.pattern.permute.xlu0 4
  %222 = vperm.xlu0 %221, %v213
  %v223 = vpop.permute.xlu0 %222
  %224 = vset.pattern.permute.xlu0 4
  %225 = vperm.xlu0 %224, %v214
  %v226 = vpop.permute.xlu0 %225
  %227 = vset.pattern.permute.xlu0 4
  %228 = vperm.xlu0 %227, %v215
  %v229 = vpop.permute.xlu0 %228
  %230 = vset.pattern.permute.xlu0 4
  %231 = vperm.xlu0 %230, %v216
  %v232 = vpop.permute.xlu0 %231
  %233 = vset.pattern.permute.xlu0 4
  %234 = vperm.xlu0 %233, %v217
  %v235 = vpop.permute.xlu0 %234
  %236 = vset.pattern.permute.xlu0 4
  %237 = vperm.xlu0 %236, %v218
  %v238 = vpop.permute.xlu0 %237
  %239 = vset.pattern.permute.xlu0 4
  %240 = vperm.xlu0 %239, %v219
  %v241 = vpop.permute.xlu0 %240
  %242 = vset.pattern.permute.xlu0 4
  %243 = vperm.xlu0 %242, %v220
  %v244 = vpop.permute.xlu0 %243
  %vm245 = vcmp.eq.s32.totalorder %v36, %v223
  %vm246 = vcmp.eq.s32.totalorder %v36, %v226
  %vm247 = vcmp.eq.s32.totalorder %v36, %v229
  %vm248 = vcmp.eq.s32.totalorder %v36, %v232
  %vm249 = vcmp.eq.s32.totalorder %v36, %v235
  %vm250 = vcmp.eq.s32.totalorder %v36, %v238
  %vm251 = vcmp.eq.s32.totalorder %v36, %v241
  %vm252 = vcmp.eq.s32.totalorder %v36, %v244
  %vm253 = vmor %vm205, %vm245
  %vm254 = vmor %vm206, %vm246
  %vm255 = vmor %vm207, %vm247
  %vm256 = vmor %vm208, %vm248
  %vm257 = vmor %vm209, %vm249
  %vm258 = vmor %vm210, %vm250
  %vm259 = vmor %vm211, %vm251
  %vm260 = vmor %vm212, %vm252
  %v261 = vsel %vm253, 1, 0
  %v262 = vsel %vm254, 1, 0
  %v263 = vsel %vm255, 1, 0
  %v264 = vsel %vm256, 1, 0
  %v265 = vsel %vm257, 1, 0
  %v266 = vsel %vm258, 1, 0
  %v267 = vsel %vm259, 1, 0
  %v268 = vsel %vm260, 1, 0
  %v269 = vcvt.s32.f32 %v261
  %v270 = vcvt.s32.f32 %v262
  %v271 = vcvt.s32.f32 %v263
  %v272 = vcvt.s32.f32 %v264
  %v273 = vcvt.s32.f32 %v265
  %v274 = vcvt.s32.f32 %v266
  %v275 = vcvt.s32.f32 %v267
  %v276 = vcvt.s32.f32 %v268
  %v277 = vpack.c.bf16 %v270, %v269
  %v278 = vpack.c.bf16 %v272, %v271
  %v279 = vpack.c.bf16 %v274, %v273
  %v280 = vpack.c.bf16 %v276, %v275
  %v281 = vld [vmem:[%s2] sm:$0xf]
  %v282 = vld [vmem:[%s2 + $0x4] sm:$0xf]
  %v283 = vld [vmem:[%s2 + $0x8] sm:$0xf]
  %v284 = vld [vmem:[%s2 + $0xc] sm:$0xf]
  %v285 = vld [vmem:[%s2 + $0x10] sm:$0xf]
  %v286 = vld [vmem:[%s2 + $0x14] sm:$0xf]
  %v287 = vld [vmem:[%s2 + $0x18] sm:$0xf]
  %v288 = vld [vmem:[%s2 + $0x1c] sm:$0xf]
  %v289 = vld [vmem:[%s2 + $0x20] sm:$0xf]
  %v290 = vld [vmem:[%s2 + $0x24] sm:$0xf]
  %v291 = vld [vmem:[%s2 + $0x28] sm:$0xf]
  %v292 = vld [vmem:[%s2 + $0x2c] sm:$0xf]
  %v293 = vld [vmem:[%s2 + $0x30] sm:$0xf]
  %v294 = vld [vmem:[%s2 + $0x34] sm:$0xf]
  %v295 = vld [vmem:[%s2 + $0x38] sm:$0xf]
  %v296 = vld [vmem:[%s2 + $0x3c] sm:$0xf]
  %v297 = vld [vmem:[%s1] sm:$0xff]
  %v298 = vld [vmem:[%s1 + $0x8] sm:$0xff]
  %v299 = vld [vmem:[%s1 + $0x10] sm:$0xff]
  %v300 = vld [vmem:[%s1 + $0x18] sm:$0xff]
  %v301 = vld [vmem:[%s1 + $0x20] sm:$0xff]
  %v302 = vld [vmem:[%s1 + $0x28] sm:$0xff]
  %v303 = vld [vmem:[%s1 + $0x30] sm:$0xff]
  %v304 = vld [vmem:[%s1 + $0x38] sm:$0xff]
  %v305 = vld [vmem:[%s3] sm:$0x3]
  %307 = vset.pattern.permute.xlu0 0
  %308 = vperm.xlu0 %307, %v297
  %v309 = vpop.permute.xlu0 %308
  %312 = vset.pattern.permute.xlu0 0
  %313 = vperm.xlu0 %312, %v298
  %v314 = vpop.permute.xlu0 %313
  %317 = vset.pattern.permute.xlu0 0
  %318 = vperm.xlu0 %317, %v299
  %v319 = vpop.permute.xlu0 %318
  %322 = vset.pattern.permute.xlu0 0
  %323 = vperm.xlu0 %322, %v300
  %v324 = vpop.permute.xlu0 %323
  %327 = vset.pattern.permute.xlu0 0
  %328 = vperm.xlu0 %327, %v301
  %v329 = vpop.permute.xlu0 %328
  %332 = vset.pattern.permute.xlu0 0
  %333 = vperm.xlu0 %332, %v302
  %v334 = vpop.permute.xlu0 %333
  %337 = vset.pattern.permute.xlu0 0
  %338 = vperm.xlu0 %337, %v303
  %v339 = vpop.permute.xlu0 %338
  %342 = vset.pattern.permute.xlu0 0
  %343 = vperm.xlu0 %342, %v304
  %v344 = vpop.permute.xlu0 %343
  %v346 = vlaneseq
  %v347 = vshrl.u32 %v346, 7
  %v348 = vsub.s32 0, %v347
  %v349 = vrot.slane %v305, %v348
  %v350 = vmul.f32 %v309, %v349
  %v351 = vmul.f32 %v314, %v349
  %v352 = vmul.f32 %v319, %v349
  %v353 = vmul.f32 %v324, %v349
  %v354 = vmul.f32 %v329, %v349
  %v355 = vmul.f32 %v334, %v349
  %v356 = vmul.f32 %v339, %v349
  %v357 = vmul.f32 %v344, %v349
  %v374 = vunpack.c.l.b16 %v281
  %v375 = vunpack.c.l.b16 %v282
  %v376 = vunpack.c.l.b16 %v283
  %v377 = vunpack.c.l.b16 %v284
  %v378 = vunpack.c.l.b16 %v285
  %v379 = vunpack.c.l.b16 %v286
  %v380 = vunpack.c.l.b16 %v287
  %v381 = vunpack.c.l.b16 %v288
  %v382 = vunpack.c.l.b16 %v289
  %v383 = vunpack.c.l.b16 %v290
  %v384 = vunpack.c.l.b16 %v291
  %v385 = vunpack.c.l.b16 %v292
  %v386 = vunpack.c.l.b16 %v293
  %v387 = vunpack.c.l.b16 %v294
  %v388 = vunpack.c.l.b16 %v295
  %v389 = vunpack.c.l.b16 %v296
  %v390 = vpack.c.b16 %v375, %v374
  %v391 = vpack.c.b16 %v377, %v376
  %v392 = vpack.c.b16 %v379, %v378
  %v393 = vpack.c.b16 %v381, %v380
  %v394 = vpack.c.b16 %v383, %v382
  %v395 = vpack.c.b16 %v385, %v384
  %v396 = vpack.c.b16 %v387, %v386
  %v397 = vpack.c.b16 %v389, %v388
  %406 = vmatprep.subr.bf16.mxu0 0
  %407 = vmatpush1.bf16.msra.mxu0 %v397
  %408 = vmatprep.subr.bf16.mxu0 0
  %409 = vmatpush1.bf16.msra.mxu0 %v396
  %410 = vmatprep.subr.bf16.mxu0 0
  %411 = vmatpush1.bf16.msra.mxu0 %v395
  %412 = vmatprep.subr.bf16.mxu0 0
  %413 = vmatpush1.bf16.msra.mxu0 %v394
  %414 = vmatprep.subr.bf16.mxu0 0
  %415 = vmatpush1.bf16.msra.mxu0 %v393
  %416 = vmatprep.subr.bf16.mxu0 0
  %417 = vmatpush1.bf16.msra.mxu0 %v392
  %418 = vmatprep.subr.bf16.mxu0 0
  %419 = vmatpush1.bf16.msra.mxu0 %v391
  %420 = vmatprep.subr.bf16.mxu0 0
  %421 = vmatpush1.bf16.msra.mxu0 %v390
  %422 = vmatprep.subr.bf16.mxu0 0
  %423 = vmatpush2.bf16.msra.mxu0 0
  %424 = vmatprep.subr.bf16.mxu0 0
  %425 = vmatpush2.bf16.msra.mxu0 0
  %426 = vmatprep.subr.bf16.mxu0 0
  %427 = vmatpush2.bf16.msra.mxu0 0
  %428 = vmatprep.subr.bf16.mxu0 0
  %429 = vmatpush2.bf16.msra.mxu0 0
  %430 = vmatprep.subr.bf16.mxu0 0
  %431 = vmatpush2.bf16.msra.mxu0 0
  %432 = vmatprep.subr.bf16.mxu0 0
  %433 = vmatpush2.bf16.msra.mxu0 0
  %434 = vmatprep.subr.bf16.mxu0 0
  %435 = vmatpush2.bf16.msra.mxu0 0
  %436 = vmatprep.subr.bf16.mxu0 0
  %437 = vmatpush2.bf16.msra.mxu0 0
  %438 = vmatprep.mubr.bf16.mxu0 0
  %439 = vmatmul.mubr.bf16.gmra.mxu0 %v277
  %v440 = vpop.f32.mrf.mxu0
  %v441 = vadd.f32 %v350, %v440
  %v442 = vpop.f32.mrf.mxu0
  %v443 = vpop.f32.mrf.mxu0
  %v444 = vadd.f32 %v351, %v443
  %v445 = vpop.f32.mrf.mxu0
  %446 = vmatprep.mubr.bf16.mxu0 0
  %447 = vmatmul.mubr.bf16.gmra.mxu0 %v278
  %v448 = vpop.f32.mrf.mxu0
  %v449 = vadd.f32 %v352, %v448
  %v450 = vpop.f32.mrf.mxu0
  %v451 = vpop.f32.mrf.mxu0
  %v452 = vadd.f32 %v353, %v451
  %v453 = vpop.f32.mrf.mxu0
  %454 = vmatprep.mubr.bf16.mxu0 0
  %455 = vmatmul.mubr.bf16.gmra.mxu0 %v279
  %v456 = vpop.f32.mrf.mxu0
  %v457 = vadd.f32 %v354, %v456
  %v458 = vpop.f32.mrf.mxu0
  %v459 = vpop.f32.mrf.mxu0
  %v460 = vadd.f32 %v355, %v459
  %v461 = vpop.f32.mrf.mxu0
  %462 = vmatprep.mubr.bf16.mxu0 0
  %463 = vmatmul.mubr.bf16.gmra.mxu0 %v280
  %v464 = vpop.f32.mrf.mxu0
  %v465 = vadd.f32 %v356, %v464
  %v466 = vpop.f32.mrf.mxu0
  %v467 = vpop.f32.mrf.mxu0
  %v468 = vadd.f32 %v357, %v467
  %v469 = vpop.f32.mrf.mxu0
  %470 = vdwg.mxu0
  %471 = vset.pattern.permute.xlu0 1
  %472 = vperm.xlu0 %471, %v297
  %v473 = vpop.permute.xlu0 %472
  %475 = vset.pattern.permute.xlu0 1
  %476 = vperm.xlu0 %475, %v298
  %v477 = vpop.permute.xlu0 %476
  %479 = vset.pattern.permute.xlu0 1
  %480 = vperm.xlu0 %479, %v299
  %v481 = vpop.permute.xlu0 %480
  %483 = vset.pattern.permute.xlu0 1
  %484 = vperm.xlu0 %483, %v300
  %v485 = vpop.permute.xlu0 %484
  %487 = vset.pattern.permute.xlu0 1
  %488 = vperm.xlu0 %487, %v301
  %v489 = vpop.permute.xlu0 %488
  %491 = vset.pattern.permute.xlu0 1
  %492 = vperm.xlu0 %491, %v302
  %v493 = vpop.permute.xlu0 %492
  %495 = vset.pattern.permute.xlu0 1
  %496 = vperm.xlu0 %495, %v303
  %v497 = vpop.permute.xlu0 %496
  %499 = vset.pattern.permute.xlu0 1
  %500 = vperm.xlu0 %499, %v304
  %v501 = vpop.permute.xlu0 %500
  %v503 = vlaneseq
  %v504 = vshrl.u32 %v503, 7
  %v505 = vsub.s32 1, %v504
  %v506 = vrot.slane %v305, %v505
  %v507 = vmul.f32 %v473, %v506
  %v508 = vmul.f32 %v477, %v506
  %v509 = vmul.f32 %v481, %v506
  %v510 = vmul.f32 %v485, %v506
  %v511 = vmul.f32 %v489, %v506
  %v512 = vmul.f32 %v493, %v506
  %v513 = vmul.f32 %v497, %v506
  %v514 = vmul.f32 %v501, %v506
  %v515 = vadd.f32 %v441, %v507
  %v516 = vadd.f32 %v444, %v508
  %v517 = vadd.f32 %v449, %v509
  %v518 = vadd.f32 %v452, %v510
  %v519 = vadd.f32 %v457, %v511
  %v520 = vadd.f32 %v460, %v512
  %v521 = vadd.f32 %v465, %v513
  %v522 = vadd.f32 %v468, %v514
  %v523 = vld [vmem:[%s4] sm:$0x1]
  %v525 = vlaneseq
  %v526 = vshrl.u32 %v525, 7
  %v527 = vsub.s32 0, %v526
  %v528 = vrot.slane %v523, %v527
  %v530 = vadd.f32 %v515, %v528
  %v531 = vadd.f32 %v516, %v528
  %v532 = vadd.f32 %v517, %v528
  %v533 = vadd.f32 %v518, %v528
  %v534 = vadd.f32 %v519, %v528
  %v535 = vadd.f32 %v520, %v528
  %v536 = vadd.f32 %v521, %v528
  %v537 = vadd.f32 %v522, %v528
  %v538 = vmax.f32 %v530, 0.0
  %v539 = vmax.f32 %v531, 0.0
  %v540 = vmax.f32 %v532, 0.0
  %v541 = vmax.f32 %v533, 0.0
  %v542 = vmax.f32 %v534, 0.0
  %v543 = vmax.f32 %v535, 0.0
  %v544 = vmax.f32 %v536, 0.0
  %v545 = vmax.f32 %v537, 0.0
  %v546 = vpack.c.bf16 %v539, %v538
  %v547 = vpack.c.bf16 %v541, %v540
  %v548 = vpack.c.bf16 %v543, %v542
  %v549 = vpack.c.bf16 %v545, %v544
  %v550 = vld [vmem:[%s5] sm:$0xf]
  %v551 = vld [vmem:[%s5 + $0x4] sm:$0xf]
  %v552 = vld [vmem:[%s5 + $0x8] sm:$0xf]
  %v553 = vld [vmem:[%s5 + $0xc] sm:$0xf]
  %v554 = vld [vmem:[%s5 + $0x10] sm:$0xf]
  %v555 = vld [vmem:[%s5 + $0x14] sm:$0xf]
  %v556 = vld [vmem:[%s5 + $0x18] sm:$0xf]
  %v557 = vld [vmem:[%s5 + $0x1c] sm:$0xf]
  %v558 = vld [vmem:[%s5 + $0x20] sm:$0xf]
  %v559 = vld [vmem:[%s5 + $0x24] sm:$0xf]
  %v560 = vld [vmem:[%s5 + $0x28] sm:$0xf]
  %v561 = vld [vmem:[%s5 + $0x2c] sm:$0xf]
  %v562 = vld [vmem:[%s5 + $0x30] sm:$0xf]
  %v563 = vld [vmem:[%s5 + $0x34] sm:$0xf]
  %v564 = vld [vmem:[%s5 + $0x38] sm:$0xf]
  %v565 = vld [vmem:[%s5 + $0x3c] sm:$0xf]
  %v566 = vld [vmem:[%s6] sm:$0x1]
  %v568 = vlaneseq
  %v569 = vshrl.u32 %v568, 7
  %v570 = vsub.s32 0, %v569
  %v571 = vrot.slane %v566, %v570
  %v589 = vunpack.c.l.b16 %v550
  %v590 = vunpack.c.l.b16 %v551
  %v591 = vunpack.c.l.b16 %v552
  %v592 = vunpack.c.l.b16 %v553
  %v593 = vunpack.c.l.b16 %v554
  %v594 = vunpack.c.l.b16 %v555
  %v595 = vunpack.c.l.b16 %v556
  %v596 = vunpack.c.l.b16 %v557
  %v597 = vunpack.c.l.b16 %v558
  %v598 = vunpack.c.l.b16 %v559
  %v599 = vunpack.c.l.b16 %v560
  %v600 = vunpack.c.l.b16 %v561
  %v601 = vunpack.c.l.b16 %v562
  %v602 = vunpack.c.l.b16 %v563
  %v603 = vunpack.c.l.b16 %v564
  %v604 = vunpack.c.l.b16 %v565
  %v605 = vpack.c.b16 %v590, %v589
  %v606 = vpack.c.b16 %v592, %v591
  %v607 = vpack.c.b16 %v594, %v593
  %v608 = vpack.c.b16 %v596, %v595
  %v609 = vpack.c.b16 %v598, %v597
  %v610 = vpack.c.b16 %v600, %v599
  %v611 = vpack.c.b16 %v602, %v601
  %v612 = vpack.c.b16 %v604, %v603
  %621 = vmatprep.subr.bf16.mxu0 0
  %622 = vmatpush1.bf16.msra.mxu0 %v612
  %623 = vmatprep.subr.bf16.mxu0 0
  %624 = vmatpush1.bf16.msra.mxu0 %v611
  %625 = vmatprep.subr.bf16.mxu0 0
  %626 = vmatpush1.bf16.msra.mxu0 %v610
  %627 = vmatprep.subr.bf16.mxu0 0
  %628 = vmatpush1.bf16.msra.mxu0 %v609
  %629 = vmatprep.subr.bf16.mxu0 0
  %630 = vmatpush1.bf16.msra.mxu0 %v608
  %631 = vmatprep.subr.bf16.mxu0 0
  %632 = vmatpush1.bf16.msra.mxu0 %v607
  %633 = vmatprep.subr.bf16.mxu0 0
  %634 = vmatpush1.bf16.msra.mxu0 %v606
  %635 = vmatprep.subr.bf16.mxu0 0
  %636 = vmatpush1.bf16.msra.mxu0 %v605
  %637 = vmatprep.subr.bf16.mxu0 0
  %638 = vmatpush2.bf16.msra.mxu0 0
  %639 = vmatprep.subr.bf16.mxu0 0
  %640 = vmatpush2.bf16.msra.mxu0 0
  %641 = vmatprep.subr.bf16.mxu0 0
  %642 = vmatpush2.bf16.msra.mxu0 0
  %643 = vmatprep.subr.bf16.mxu0 0
  %644 = vmatpush2.bf16.msra.mxu0 0
  %645 = vmatprep.subr.bf16.mxu0 0
  %646 = vmatpush2.bf16.msra.mxu0 0
  %647 = vmatprep.subr.bf16.mxu0 0
  %648 = vmatpush2.bf16.msra.mxu0 0
  %649 = vmatprep.subr.bf16.mxu0 0
  %650 = vmatpush2.bf16.msra.mxu0 0
  %651 = vmatprep.subr.bf16.mxu0 0
  %652 = vmatpush2.bf16.msra.mxu0 0
  %653 = vmatprep.mubr.bf16.mxu0 0
  %654 = vmatmul.mubr.bf16.gmra.mxu0 %v546
  %v655 = vpop.f32.mrf.mxu0
  %v656 = vadd.f32 %v571, %v655
  %v657 = vpop.f32.mrf.mxu0
  %v658 = vpop.f32.mrf.mxu0
  %v659 = vadd.f32 %v571, %v658
  %v660 = vpop.f32.mrf.mxu0
  %661 = vmatprep.mubr.bf16.mxu0 0
  %662 = vmatmul.mubr.bf16.gmra.mxu0 %v547
  %v663 = vpop.f32.mrf.mxu0
  %v664 = vadd.f32 %v571, %v663
  %v665 = vpop.f32.mrf.mxu0
  %v666 = vpop.f32.mrf.mxu0
  %v667 = vadd.f32 %v571, %v666
  %v668 = vpop.f32.mrf.mxu0
  %669 = vmatprep.mubr.bf16.mxu0 0
  %670 = vmatmul.mubr.bf16.gmra.mxu0 %v548
  %v671 = vpop.f32.mrf.mxu0
  %v672 = vadd.f32 %v571, %v671
  %v673 = vpop.f32.mrf.mxu0
  %v674 = vpop.f32.mrf.mxu0
  %v675 = vadd.f32 %v571, %v674
  %v676 = vpop.f32.mrf.mxu0
  %677 = vmatprep.mubr.bf16.mxu0 0
  %678 = vmatmul.mubr.bf16.gmra.mxu0 %v549
  %v679 = vpop.f32.mrf.mxu0
  %v680 = vadd.f32 %v571, %v679
  %v681 = vpop.f32.mrf.mxu0
  %v682 = vpop.f32.mrf.mxu0
  %v683 = vadd.f32 %v571, %v682
  %v684 = vpop.f32.mrf.mxu0
  %685 = vdwg.mxu0
  %vm686 = vcmask 15360
  %687 = vst.msk [vmem:[%s7] sm:$0xff] %vm686, %v656
  %688 = vst.msk [vmem:[%s7 + $0x8] sm:$0xff] %vm686, %v659
  %689 = vst.msk [vmem:[%s7 + $0x10] sm:$0xff] %vm686, %v664
  %690 = vst.msk [vmem:[%s7 + $0x18] sm:$0xff] %vm686, %v667
  %691 = vst.msk [vmem:[%s7 + $0x20] sm:$0xff] %vm686, %v672
  %692 = vst.msk [vmem:[%s7 + $0x28] sm:$0xff] %vm686, %v675
  %693 = vst.msk [vmem:[%s7 + $0x30] sm:$0xff] %vm686, %v680
  %694 = vst.msk [vmem:[%s7 + $0x38] sm:$0xff] %vm686, %v683
  // Predicated region
  $region30: #{tabular_model_forward.1} parent=0 // pred_check
    _
  $region31: #{tabular_model_forward.1} parent=0 // pred_check_branch
    %696 = sbr.rel (0) target = $region33
  $region32: #{tabular_model_forward.1} parent=0 // pred_region
    _
  $region33: #{tabular_model_forward.1} parent=0 // pred_fallthru
    _
  // Predicated region
  $region34: #{tabular_model_forward.1} parent=0 // pred_check
    _
  $region35: #{tabular_model_forward.1} parent=0 // pred_check_branch
    %698 = sbr.rel (0) target = $region37
  $region36: #{tabular_model_forward.1} parent=0 // pred_region
    _
  $region37: #{tabular_model_forward.1} parent=0 // pred_fallthru
    _

</llo_original>
